<compile_context>
chip_gen: v6e
topology: v6e:2x2x1
jax: 0.10.0
libtpu: 0.0.40
codegen_flags: <defaults>
</compile_context>

<pallas_src>
import functools

import jax
import jax.numpy as jnp
from jax.experimental import pallas as pl
from jax.experimental.pallas import tpu as pltpu


def _epilogue(pre, p, o_ref):
    """pre: [tm, tn] f32 pre-activations; p: [3, tn] (exp_r, b_gate, b_mag)."""
    scale = p[0:1, :]          # broadcast over rows
    bg = p[1:2, :]
    bm = p[2:3, :]
    pi_gate = pre + bg
    pi_mag = pre * scale + bm
    # heaviside(x, 0): keep relu(pi_mag) where pi_gate > 0, else 0 (x==0 -> 0).
    f_mag = jnp.maximum(pi_mag, 0.0)
    o_ref[...] = jnp.where(pi_gate > 0.0, f_mag, 0.0).astype(o_ref.dtype)


def _gated_encoder_kernel_fused(x_ref, wt_ref, p_ref, o_ref):
    """Single K step: matmul + gating epilogue, no accumulator round trip."""
    pre = jnp.dot(x_ref[...], wt_ref[...], preferred_element_type=jnp.float32)
    _epilogue(pre, p_ref[...], o_ref)


def _gated_encoder_kernel_ktiled(x_ref, wt_ref, p_ref, o_ref, acc_ref):
    """K-tiled variant: f32 accumulator over the d_in reduction axis."""
    k = pl.program_id(2)

    @pl.when(k == 0)
    def _():
        acc_ref[...] = jnp.zeros_like(acc_ref)

    acc_ref[...] += jnp.dot(x_ref[...], wt_ref[...],
                            preferred_element_type=jnp.float32)

    @pl.when(k == pl.num_programs(2) - 1)
    def _():
        _epilogue(acc_ref[...], p_ref[...], o_ref)


def prepare_gated_encoder_params(w_enc, r_mag, b_gate, b_mag,
                                 *, compute_dtype=jnp.bfloat16):
    """One-time parameter prep (do at init, NOT per forward call).

    - Transposes W_enc [d_sae, d_in] -> W_t [d_in, d_sae] once.
    - Casts W_t to the matmul compute dtype (bf16 by default).
    - Precomputes exp(r_mag) and stacks (exp_r, b_gate, b_mag) -> [3, d_sae] f32.
    """
    w_t = jnp.asarray(w_enc).T.astype(compute_dtype)
    params = jnp.stack(
        [jnp.exp(jnp.asarray(r_mag, jnp.float32)),
         jnp.asarray(b_gate, jnp.float32),
         jnp.asarray(b_mag, jnp.float32)],
        axis=0,
    )
    return w_t, params


def _pick_tile(dim, candidates):
    for c in candidates:
        if dim % c == 0:
            return c
    return dim


@functools.partial(jax.jit, static_argnames=("tm", "tn", "tk"))
def gated_encoder_forward(x, w_t, params, *, tm=None, tn=None, tk=None):
    """Eval-mode forward of GatedEncoder.

    x:      [B, d_in]
    w_t:    [d_in, d_sae]  (pre-transposed; bf16 or f32)
    params: [3, d_sae]     f32 rows = (exp(r_mag), b_gate, b_mag)
    returns hidden_acts [B, d_sae] float32
    """
    B, d_in = x.shape
    d_sae = w_t.shape[1]

    # Tile selection: single block for small problems, large MXU-friendly
    # tiles otherwise (tm mult of 8, tn mult of 128 / lane-dense output,
    # tk mult of 128).
    if tm is None:
        tm = B if B <= 256 else _pick_tile(B, (256, 128, 64, 32, 16, 8))
    if tn is None:
        tn = d_sae if d_sae <= 512 else _pick_tile(d_sae, (512, 384, 256, 128))
    if tk is None:
        tk = d_in if d_in <= 2048 else _pick_tile(
            d_in, (2048, 1536, 1024, 512, 256, 128))
    assert B % tm == 0 and d_sae % tn == 0 and d_in % tk == 0, \
        (B, tm, d_sae, tn, d_in, tk)
    nk = d_in // tk

    # Cast activations to the matmul compute dtype (matches w_t).
    x_c = x.astype(w_t.dtype)

    # Explicit scoped-VMEM budget: double-buffered inputs + output (+acc) + headroom.
    in_bytes = (tm * tk * x_c.dtype.itemsize
                + tk * tn * w_t.dtype.itemsize
                + 3 * tn * 4)
    out_bytes = tm * tn * 4
    acc_bytes = tm * tn * 4 if nk > 1 else 0
    vmem_limit = int(2 * (in_bytes + out_bytes) * 1.5) + acc_bytes + (4 << 20)
    vmem_limit = min(vmem_limit, 96 << 20)

    if nk == 1:
        grid = (B // tm, d_sae // tn)
        return pl.pallas_call(
            _gated_encoder_kernel_fused,
            out_shape=jax.ShapeDtypeStruct((B, d_sae), jnp.float32),
            grid_spec=pltpu.PrefetchScalarGridSpec(
                num_scalar_prefetch=0,
                grid=grid,
                in_specs=[
                    pl.BlockSpec((tm, d_in), lambda i, j: (i, 0)),   # x tile
                    pl.BlockSpec((d_in, tn), lambda i, j: (0, j)),   # W_t tile
                    pl.BlockSpec((3, tn), lambda i, j: (0, j)),      # params
                ],
                out_specs=pl.BlockSpec((tm, tn), lambda i, j: (i, j)),
            ),
            compiler_params=pltpu.CompilerParams(
                dimension_semantics=("parallel", "parallel"),
                vmem_limit_bytes=vmem_limit,
            ),
        )(x_c, w_t, params)

    grid = (B // tm, d_sae // tn, nk)
    return pl.pallas_call(
        _gated_encoder_kernel_ktiled,
        out_shape=jax.ShapeDtypeStruct((B, d_sae), jnp.float32),
        grid_spec=pltpu.PrefetchScalarGridSpec(
            num_scalar_prefetch=0,
            grid=grid,
            in_specs=[
                pl.BlockSpec((tm, tk), lambda i, j, k: (i, k)),      # x tile
                pl.BlockSpec((tk, tn), lambda i, j, k: (k, j)),      # W_t tile
                pl.BlockSpec((3, tn), lambda i, j, k: (0, j)),       # params
            ],
            out_specs=pl.BlockSpec((tm, tn), lambda i, j, k: (i, j)),
            scratch_shapes=[pltpu.VMEM((tm, tn), jnp.float32)],
        ),
        compiler_params=pltpu.CompilerParams(
            dimension_semantics=("parallel", "parallel", "arbitrary"),
            vmem_limit_bytes=vmem_limit,
        ),
    )(x_c, w_t, params)


def reference_forward(x, w_enc, r_mag, b_gate, b_mag):
    pre = x @ w_enc.T
    pi_gate = pre + b_gate
    pi_mag = pre * jnp.exp(r_mag) + b_mag
    f_gate = (pi_gate > 0.0).astype(jnp.float32)
    f_mag = jnp.maximum(pi_mag, 0.0)
    return f_gate * f_mag


def _make_inputs(key, B, d_in, d_sae, init_norm):
    k_w, k_x, k_r, k_bg, k_bm = jax.random.split(key, 5)
    # W_enc init: per-row randn, normalized to unit norm, scaled by init_norm.
    w_enc = jax.random.normal(k_w, (d_sae, d_in), dtype=jnp.float32)
    w_enc = w_enc / jnp.linalg.norm(w_enc, axis=-1, keepdims=True)
    w_enc = w_enc * init_norm
    # r_mag / b_gate / b_mag are zeros in PyTorch; use small deterministic
    # non-zero values so the gating/scaling paths are exercised.
    r_mag = 0.1 * jax.random.normal(k_r, (d_sae,), dtype=jnp.float32)
    b_gate = 0.05 * jax.random.normal(k_bg, (d_sae,), dtype=jnp.float32)
    b_mag = 0.05 * jax.random.normal(k_bm, (d_sae,), dtype=jnp.float32)
    x = jax.random.normal(k_x, (B, d_in), dtype=jnp.float32)
    return x, w_enc, r_mag, b_gate, b_mag


if __name__ == "__main__":
    key = jax.random.PRNGKey(0)
    k0, k1 = jax.random.split(key, 2)

    # ------------------------------------------------------------------
    # 1) Toy config (d_in=64, d_sae=256, B=16), f32: tight semantics check.
    # ------------------------------------------------------------------
    x, w_enc, r_mag, b_gate, b_mag = _make_inputs(k0, B=16, d_in=64,
                                                  d_sae=256, init_norm=0.1)

    w_t32, p32 = prepare_gated_encoder_params(
        w_enc, r_mag, b_gate, b_mag, compute_dtype=jnp.float32)
    out32 = jax.block_until_ready(gated_encoder_forward(x, w_t32, p32))
    ref32 = reference_forward(x, w_enc, r_mag, b_gate, b_mag)
    assert out32.shape == (16, 256)
    assert jnp.allclose(out32, ref32, atol=1e-5, rtol=1e-5)

    # bf16 weights/activations (production default): compare against a
    # reference using the same bf16-cast matmul inputs.  heaviside is
    # discontinuous at 0, so exclude a tiny band around pi_gate == 0 where the
    # gate bit is not numerically well-defined under rounding.
    w_t16, p16 = prepare_gated_encoder_params(
        w_enc, r_mag, b_gate, b_mag, compute_dtype=jnp.bfloat16)
    out16 = jax.block_until_ready(gated_encoder_forward(x, w_t16, p16))
    pre_ref = jnp.dot(x.astype(jnp.bfloat16), w_enc.T.astype(jnp.bfloat16),
                      preferred_element_type=jnp.float32)
    pi_gate_ref = pre_ref + b_gate
    pi_mag_ref = pre_ref * jnp.exp(r_mag) + b_mag
    ref16 = jnp.where(pi_gate_ref > 0.0, jnp.maximum(pi_mag_ref, 0.0), 0.0)
    decided = jnp.abs(pi_gate_ref) > 1e-4
    close = jnp.abs(out16 - ref16) <= (1e-4 + 1e-3 * jnp.abs(ref16))
    assert out16.shape == (16, 256)
    assert bool(jnp.all(jnp.where(decided, close, True)))

    # ------------------------------------------------------------------
    # 2) Medium config with forced K tiling (tk=128 -> 2 reduction steps),
    #    f32: exercises the accumulator / pl.when init-finalize path.
    # ------------------------------------------------------------------
    x2, w_enc2, r_mag2, b_gate2, b_mag2 = _make_inputs(
        k1, B=32, d_in=256, d_sae=512, init_norm=0.1)
    w_t2, p2 = prepare_gated_encoder_params(
        w_enc2, r_mag2, b_gate2, b_mag2, compute_dtype=jnp.float32)
    out2 = jax.block_until_ready(
        gated_encoder_forward(x2, w_t2, p2, tk=128))
    ref2 = reference_forward(x2, w_enc2, r_mag2, b_gate2, b_mag2)
    assert out2.shape == (32, 512)
    assert jnp.allclose(out2, ref2, atol=1e-4, rtol=1e-4)

    print("KERNEL_OK")
</pallas_src>

<mosaic_0001>
module attributes {stable_mosaic.version = 11 : i64} {
  func.func @_gated_encoder_kernel_fused(%arg0: i32, %arg1: i32, %arg2: memref<16x64xf32, #tpu.memory_space<vmem>>, %arg3: memref<64x256xf32, #tpu.memory_space<vmem>>, %arg4: memref<3x256xf32, #tpu.memory_space<vmem>>, %arg5: memref<16x256xf32, #tpu.memory_space<vmem>>) attributes {dimension_semantics = [#tpu.dimension_semantics<parallel>, #tpu.dimension_semantics<parallel>], iteration_bounds = array<i64: 1, 1>, scalar_prefetch = 0 : i64, scratch_operands = 0 : i64, tpu.core_type = #tpu.core_type<tc>, window_params = [{transform_indices = @transform_0, window_bounds = array<i64: 16, 64>}, {transform_indices = @transform_1, window_bounds = array<i64: 64, 256>}, {transform_indices = @transform_2, window_bounds = array<i64: 3, 256>}, {transform_indices = @transform_3, window_bounds = array<i64: 16, 256>}]} {
    %c0 = arith.constant 0 : index
    %c0_0 = arith.constant 0 : index
    %0 = vector.load %arg2[%c0, %c0_0] : memref<16x64xf32, #tpu.memory_space<vmem>>, vector<16x64xf32>
    %c0_1 = arith.constant 0 : index
    %c0_2 = arith.constant 0 : index
    %1 = vector.load %arg3[%c0_1, %c0_2] : memref<64x256xf32, #tpu.memory_space<vmem>>, vector<64x256xf32>
    %cst = arith.constant dense<0.000000e+00> : vector<16x256xf32>
    %2 = tpu.matmul %0, %1, %cst {dimension_numbers = #tpu.dot_dimension_numbers<[1], [0], [0], [1], [0, 0, 1, 1], [], []>} : vector<16x64xf32>, vector<64x256xf32>, vector<16x256xf32> -> vector<16x256xf32>
    %c0_3 = arith.constant 0 : index
    %c0_4 = arith.constant 0 : index
    %3 = vector.load %arg4[%c0_3, %c0_4] : memref<3x256xf32, #tpu.memory_space<vmem>>, vector<3x256xf32>
    %4 = vector.extract_strided_slice %3 {offsets = [0, 0], sizes = [1, 256], strides = [1, 1]} : vector<3x256xf32> to vector<1x256xf32>
    %5 = vector.extract_strided_slice %3 {offsets = [1, 0], sizes = [1, 256], strides = [1, 1]} : vector<3x256xf32> to vector<1x256xf32>
    %6 = vector.extract_strided_slice %3 {offsets = [2, 0], sizes = [1, 256], strides = [1, 1]} : vector<3x256xf32> to vector<1x256xf32>
    %7 = vector.broadcast %5 : vector<1x256xf32> to vector<16x256xf32>
    %8 = arith.addf %2, %7 : vector<16x256xf32>
    %9 = vector.broadcast %4 : vector<1x256xf32> to vector<16x256xf32>
    %10 = arith.mulf %2, %9 : vector<16x256xf32>
    %11 = vector.broadcast %6 : vector<1x256xf32> to vector<16x256xf32>
    %12 = arith.addf %10, %11 : vector<16x256xf32>
    %cst_5 = arith.constant 0.000000e+00 : f32
    %13 = vector.broadcast %cst_5 : f32 to vector<16x256xf32>
    %14 = arith.maximumf %12, %13 : vector<16x256xf32>
    %cst_6 = arith.constant 0.000000e+00 : f32
    %15 = vector.broadcast %cst_6 : f32 to vector<16x256xf32>
    %16 = arith.cmpf ogt, %8, %15 : vector<16x256xf32>
    %cst_7 = arith.constant 0.000000e+00 : f32
    %17 = vector.broadcast %cst_7 : f32 to vector<16x256xf32>
    %18 = arith.select %16, %14, %17 : vector<16x256xi1>, vector<16x256xf32>
    %c0_8 = arith.constant 0 : index
    %c0_9 = arith.constant 0 : index
    %19 = vector.load %arg5[%c0_8, %c0_9] : memref<16x256xf32, #tpu.memory_space<vmem>>, vector<16x256xf32>
    tpu.vector_store %arg5[%c0_8, %c0_9], %18 {strides = array<i32>} : memref<16x256xf32, #tpu.memory_space<vmem>>, vector<16x256xf32>,
    return
  }
  func.func @transform_0(%arg0: i32, %arg1: i32) -> (i32, i32) {
    %c0_i32 = arith.constant 0 : i32
    %c0_i32_0 = arith.constant 0 : i32
    return %arg0, %c0_i32 : i32, i32
  }
  func.func @transform_1(%arg0: i32, %arg1: i32) -> (i32, i32) {
    %c0_i32 = arith.constant 0 : i32
    %c0_i32_0 = arith.constant 0 : i32
    return %c0_i32, %arg1 : i32, i32
  }
  func.func @transform_2(%arg0: i32, %arg1: i32) -> (i32, i32) {
    %c0_i32 = arith.constant 0 : i32
    %c0_i32_0 = arith.constant 0 : i32
    return %c0_i32, %arg1 : i32, i32
  }
  func.func @transform_3(%arg0: i32, %arg1: i32) -> (i32, i32) {
    %c0_i32 = arith.constant 0 : i32
    return %arg0, %arg1 : i32, i32
  }
}

</mosaic_0001>

<llo_original>
// kernel: gated_encoder_forward.1
$region0: #{gated_encoder_forward.1}
  #allocation0 [shape = 'u32[]', space=smem, size = 0x4, offset = 0x4, fixed_abs, tag = 'smem constant byte address 0x4 - core index']
  #allocation1 [shape = 'u32[144,128]{1,0:T(1,128)}', space=vmem, size = 0x12000, scoped, tag = 'internal scratch']
  %s0 = inlined_call_operand.hbm [shape: f32[16,64], index: 0, kind: input, shape index: {}]
  %s1 = inlined_call_operand.hbm [shape: f32[64,256], index: 1, kind: input, shape index: {}]
  %s2 = inlined_call_operand.hbm [shape: f32[3,256], index: 2, kind: input, shape index: {}]
  %s3 = inlined_call_operand.hbm [shape: f32[16,256], index: 3, kind: output, shape index: {}]
  %s4 = sld [smem:[#allocation0]]
  $region34: #{gated_encoder_forward.1} parent=0
    _
  %s6 = ssub.s32 1, %s4
  %s7 = scalar_select 0, %s6, %s4
  $region1: #{gated_encoder_forward.1} parent=0
    #allocation2 [shape = 'u8[8192]{0}', space=vmem, size = 0x2000, scoped, tag = 'input window, operand 0, single buffered']
    #allocation3 [shape = 's32[1]{0}', space=sflag, size = 0x4, scoped, tag = 'scoped memory for gated_encoder_forward.1']
    #allocation4 [shape = 's32[1]{0}', space=sflag, size = 0x4, scoped, tag = 'scoped memory for gated_encoder_forward.1']
    #allocation5 [shape = 'u8[65536]{0}', space=vmem, size = 0x10000, scoped, tag = 'input window, operand 1, single buffered']
    #allocation6 [shape = 's32[1]{0}', space=sflag, size = 0x4, scoped, tag = 'scoped memory for gated_encoder_forward.1']
    #allocation7 [shape = 'u8[4096]{0}', space=vmem, size = 0x1000, scoped, tag = 'input window, operand 2, single buffered']
    #allocation8 [shape = 'u8[16384]{0}', space=vmem, size = 0x4000, scoped, tag = 'output window, operand 0, single buffered']
    %8 = vsyncpa [#allocation3], 0
    %9 = vsyncpa [#allocation6], 0
    %10 = vsyncpa [#allocation4], 0
    // Predicated region
    $region2: #{gated_encoder_forward.1} parent=1 // pred_check
      _
    $region3: #{gated_encoder_forward.1} parent=1 // pred_check_branch
      %12 = sbr.rel (0) target = $region5
    $region4: #{gated_encoder_forward.1} parent=1 // pred_region
      %s14 = ssub.s32 256, 256
      %15 = vsyncadd [#allocation3], %s14
      %s16 = sshll.u32 [#allocation2], 4
      %s17 = int_to_ptr.vmem [resolvable:$true] %s16
      %22 = dma.hbm_to_vmem [thread:$0]  %s0, 256, %s17, [#allocation3], 128, 128, 8
    $region5: #{gated_encoder_forward.1} parent=1 // pred_fallthru
      _
    // Predicated region
    $region6: #{gated_encoder_forward.1} parent=1 // pred_check
      _
    $region7: #{gated_encoder_forward.1} parent=1 // pred_check_branch
      %24 = sbr.rel (0) target = $region9
    $region8: #{gated_encoder_forward.1} parent=1 // pred_region
      %s26 = ssub.s32 2048, 2048
      %27 = vsyncadd [#allocation6], %s26
      %s28 = sshll.u32 [#allocation5], 4
      %s29 = int_to_ptr.vmem [resolvable:$true] %s28
      %34 = dma.hbm_to_vmem [thread:$0]  %s1, 2048, %s29, [#allocation6], 256, 256, 16
    $region9: #{gated_encoder_forward.1} parent=1 // pred_fallthru
      _
    // Predicated region
    $region10: #{gated_encoder_forward.1} parent=1 // pred_check
      _
    $region11: #{gated_encoder_forward.1} parent=1 // pred_check_branch
      %36 = sbr.rel (0) target = $region13
    $region12: #{gated_encoder_forward.1} parent=1 // pred_region
      %s38 = ssub.s32 128, 128
      %39 = vsyncadd [#allocation6], %s38
      %s41 = sshll.u32 [#allocation7], 4
      %s42 = int_to_ptr.vmem [resolvable:$true] %s41
      %44 = dma.hbm_to_vmem [thread:$0]  %s2, 128, %s42, [#allocation6]
    $region13: #{gated_encoder_forward.1} parent=1 // pred_fallthru
      _
    // Predicated region
    $region14: #{gated_encoder_forward.1} parent=1 // pred_check
      _
    $region15: #{gated_encoder_forward.1} parent=1 // pred_check_branch
      %46 = sbr.rel (0) target = $region17
    $region16: #{gated_encoder_forward.1} parent=1 // pred_region
      %47 = dma.done [#allocation3], 256
    $region17: #{gated_encoder_forward.1} parent=1 // pred_fallthru
      _
    // Predicated region
    $region18: #{gated_encoder_forward.1} parent=1 // pred_check
      _
    $region19: #{gated_encoder_forward.1} parent=1 // pred_check_branch
      %49 = sbr.rel (0) target = $region21
    $region20: #{gated_encoder_forward.1} parent=1 // pred_region
      %50 = dma.done [#allocation6], 2048
    $region21: #{gated_encoder_forward.1} parent=1 // pred_fallthru
      _
    // Predicated region
    $region22: #{gated_encoder_forward.1} parent=1 // pred_check
      _
    $region23: #{gated_encoder_forward.1} parent=1 // pred_check_branch
      %52 = sbr.rel (0) target = $region25
    $region24: #{gated_encoder_forward.1} parent=1 // pred_region
      %53 = dma.done [#allocation6], 128
    $region25: #{gated_encoder_forward.1} parent=1 // pred_fallthru
      _
    %v54 = vld [vmem:[#allocation2] sm:$0xff]
    %v55 = vld [vmem:[#allocation2 + $0x8] sm:$0xff]
    %v56 = vld [vmem:[#allocation5] sm:$0xff]
    %v57 = vld [vmem:[#allocation5 + $0x8] sm:$0xff]
    %v58 = vld [vmem:[#allocation5 + $0x10] sm:$0xff]
    %v59 = vld [vmem:[#allocation5 + $0x18] sm:$0xff]
    %v60 = vld [vmem:[#allocation5 + $0x20] sm:$0xff]
    %v61 = vld [vmem:[#allocation5 + $0x28] sm:$0xff]
    %v62 = vld [vmem:[#allocation5 + $0x30] sm:$0xff]
    %v63 = vld [vmem:[#allocation5 + $0x38] sm:$0xff]
    %v64 = vld [vmem:[#allocation5 + $0x40] sm:$0xff]
    %v65 = vld [vmem:[#allocation5 + $0x48] sm:$0xff]
    %v66 = vld [vmem:[#allocation5 + $0x50] sm:$0xff]
    %v67 = vld [vmem:[#allocation5 + $0x58] sm:$0xff]
    %v68 = vld [vmem:[#allocation5 + $0x60] sm:$0xff]
    %v69 = vld [vmem:[#allocation5 + $0x68] sm:$0xff]
    %v70 = vld [vmem:[#allocation5 + $0x70] sm:$0xff]
    %v71 = vld [vmem:[#allocation5 + $0x78] sm:$0xff]
    %vm72 = vcmask 523264
    %v74 = vsel %vm72, %v54, 0
    %v77 = vsel %vm72, %v55, 0
    %79 = vmatprep.subr.mxu0 0.0
    %80 = vmatpush1.msra.mxu0 0.0
    %81 = vmatprep.subr.mxu0 0.0
    %82 = vmatpush1.msra.mxu0 0.0
    %83 = vmatprep.subr.mxu0 0.0
    %84 = vmatpush1.msra.mxu0 0.0
    %85 = vmatprep.subr.mxu0 0.0
    %86 = vmatpush1.msra.mxu0 0.0
    %87 = vmatprep.subr.mxu0 0.0
    %88 = vmatpush1.msra.mxu0 0.0
    %89 = vmatprep.subr.mxu0 0.0
    %90 = vmatpush1.msra.mxu0 0.0
    %91 = vmatprep.subr.mxu0 0.0
    %92 = vmatpush1.msra.mxu0 0.0
    %93 = vmatprep.subr.mxu0 0.0
    %94 = vmatpush1.msra.mxu0 0.0
    %95 = vmatprep.subr.mxu0 %v71
    %96 = vmatpush1.msra.mxu0 %v70
    %97 = vmatprep.subr.mxu0 %v69
    %98 = vmatpush1.msra.mxu0 %v68
    %99 = vmatprep.subr.mxu0 %v67
    %100 = vmatpush1.msra.mxu0 %v66
    %101 = vmatprep.subr.mxu0 %v65
    %102 = vmatpush1.msra.mxu0 %v64
    %103 = vmatprep.subr.mxu0 %v63
    %104 = vmatpush1.msra.mxu0 %v62
    %105 = vmatprep.subr.mxu0 %v61
    %106 = vmatpush1.msra.mxu0 %v60
    %107 = vmatprep.subr.mxu0 %v59
    %108 = vmatpush1.msra.mxu0 %v58
    %109 = vmatprep.subr.mxu0 %v57
    %110 = vmatpush1.msra.mxu0 %v56
    %111 = vmatprep.subr.mxu0 0.0
    %112 = vmatpush2.msra.mxu0 0.0
    %113 = vmatprep.subr.mxu0 0.0
    %114 = vmatpush2.msra.mxu0 0.0
    %115 = vmatprep.subr.mxu0 0.0
    %116 = vmatpush2.msra.mxu0 0.0
    %117 = vmatprep.subr.mxu0 0.0
    %118 = vmatpush2.msra.mxu0 0.0
    %119 = vmatprep.subr.mxu0 0.0
    %120 = vmatpush2.msra.mxu0 0.0
    %121 = vmatprep.subr.mxu0 0.0
    %122 = vmatpush2.msra.mxu0 0.0
    %123 = vmatprep.subr.mxu0 0.0
    %124 = vmatpush2.msra.mxu0 0.0
    %125 = vmatprep.subr.mxu0 0.0
    %126 = vmatpush2.msra.mxu0 0.0
    %127 = vmatprep.subr.mxu0 0.0
    %128 = vmatpush2.msra.mxu0 0.0
    %129 = vmatprep.subr.mxu0 0.0
    %130 = vmatpush2.msra.mxu0 0.0
    %131 = vmatprep.subr.mxu0 0.0
    %132 = vmatpush2.msra.mxu0 0.0
    %133 = vmatprep.subr.mxu0 0.0
    %134 = vmatpush2.msra.mxu0 0.0
    %135 = vmatprep.subr.mxu0 0.0
    %136 = vmatpush2.msra.mxu0 0.0
    %137 = vmatprep.subr.mxu0 0.0
    %138 = vmatpush2.msra.mxu0 0.0
    %139 = vmatprep.subr.mxu0 0.0
    %140 = vmatpush2.msra.mxu0 0.0
    %141 = vmatprep.subr.mxu0 0.0
    %142 = vmatpush2.msra.mxu0 0.0
    %143 = vmatprep.mubr.f32.mxu0 0.0
    %144 = vmatmul.mubr.f32.gmra.mxu0 %v74
    %v145 = vpop.f32.mrf.mxu0
    %v146 = vadd.f32 0.0, %v145
    %v147 = vpop.f32.mrf.mxu0
    %v148 = vadd.f32 0.0, %v147
    %149 = vmatprep.mubr.f32.mxu0 0.0
    %150 = vmatmul.mubr.f32.gmra.mxu0 %v77
    %v151 = vpop.f32.mrf.mxu0
    %v152 = vadd.f32 0.0, %v151
    %v153 = vpop.f32.mrf.mxu0
    %v154 = vadd.f32 0.0, %v153
    %155 = vdwg.mxu0
    %v156 = vld [vmem:[#allocation7] sm:$0x77]
    %v158 = vlaneseq
    %v159 = vshrl.u32 %v158, 7
    %v160 = vsub.s32 1, %v159
    %v161 = vrot.slane %v156, %v160
    %v162 = vlaneseq
    %v163 = vshrl.u32 %v162, 7
    %v164 = vsub.s32 5, %v163
    %v165 = vrot.slane %v156, %v164
    %v168 = vlaneseq
    %v169 = vshrl.u32 %v168, 7
    %v170 = vsub.s32 1, %v169
    %v171 = vrot.slane %v161, %v170
    %v172 = vlaneseq
    %v173 = vshrl.u32 %v172, 7
    %v174 = vsub.s32 1, %v173
    %v175 = vrot.slane %v165, %v174
    %v176 = vadd.f32 %v146, %v171
    %v177 = vadd.f32 %v148, %v175
    %v178 = vadd.f32 %v152, %v171
    %v179 = vadd.f32 %v154, %v175
    %v180 = vlaneseq
    %v181 = vshrl.u32 %v180, 7
    %v182 = vsub.s32 0, %v181
    %v183 = vrot.slane %v156, %v182
    %v184 = vlaneseq
    %v185 = vshrl.u32 %v184, 7
    %v186 = vsub.s32 4, %v185
    %v187 = vrot.slane %v156, %v186
    %v190 = vlaneseq
    %v191 = vshrl.u32 %v190, 7
    %v192 = vsub.s32 0, %v191
    %v193 = vrot.slane %v183, %v192
    %v194 = vlaneseq
    %v195 = vshrl.u32 %v194, 7
    %v196 = vsub.s32 0, %v195
    %v197 = vrot.slane %v187, %v196
    %v198 = vmul.f32 %v146, %v193
    %v199 = vmul.f32 %v148, %v197
    %v200 = vmul.f32 %v152, %v193
    %v201 = vmul.f32 %v154, %v197
    %v202 = vlaneseq
    %v203 = vshrl.u32 %v202, 7
    %v204 = vsub.s32 2, %v203
    %v205 = vrot.slane %v156, %v204
    %v206 = vlaneseq
    %v207 = vshrl.u32 %v206, 7
    %v208 = vsub.s32 6, %v207
    %v209 = vrot.slane %v156, %v208
    %v212 = vlaneseq
    %v213 = vshrl.u32 %v212, 7
    %v214 = vsub.s32 2, %v213
    %v215 = vrot.slane %v205, %v214
    %v216 = vlaneseq
    %v217 = vshrl.u32 %v216, 7
    %v218 = vsub.s32 2, %v217
    %v219 = vrot.slane %v209, %v218
    %v220 = vadd.f32 %v198, %v215
    %v221 = vadd.f32 %v199, %v219
    %v222 = vadd.f32 %v200, %v215
    %v223 = vadd.f32 %v201, %v219
    %v224 = vmax.f32 %v220, 0.0
    %v225 = vmax.f32 %v221, 0.0
    %v226 = vmax.f32 %v222, 0.0
    %v227 = vmax.f32 %v223, 0.0
    %vm228 = vcmp.gt.f32.partialorder %v176, 0.0
    %vm229 = vcmp.gt.f32.partialorder %v177, 0.0
    %vm230 = vcmp.gt.f32.partialorder %v178, 0.0
    %vm231 = vcmp.gt.f32.partialorder %v179, 0.0
    %v232 = vsel %vm228, %v224, 0.0
    %v233 = vsel %vm229, %v225, 0.0
    %v234 = vsel %vm230, %v226, 0.0
    %v235 = vsel %vm231, %v227, 0.0
    %236 = vst [vmem:[#allocation8] sm:$0xff] %v232
    %237 = vst [vmem:[#allocation8 + $0x8] sm:$0xff] %v233
    %238 = vst [vmem:[#allocation8 + $0x10] sm:$0xff] %v234
    %239 = vst [vmem:[#allocation8 + $0x18] sm:$0xff] %v235
    // Predicated region
    $region26: #{gated_encoder_forward.1} parent=1 // pred_check
      _
    $region27: #{gated_encoder_forward.1} parent=1 // pred_check_branch
      %241 = sbr.rel (0) target = $region29
    $region28: #{gated_encoder_forward.1} parent=1 // pred_region
      %s243 = ssub.s32 512, 512
      %244 = vsyncadd [#allocation4], %s243
      %s245 = sshll.u32 [#allocation8], 4
      %s246 = int_to_ptr.vmem [resolvable:$true] %s245
      %251 = dma.vmem_to_hbm [thread:$0]  %s246, 512, %s3, [#allocation4], 256, 256, 16
    $region29: #{gated_encoder_forward.1} parent=1 // pred_fallthru
      _
    // Predicated region
    $region30: #{gated_encoder_forward.1} parent=1 // pred_check
      _
    $region31: #{gated_encoder_forward.1} parent=1 // pred_check_branch
      %253 = sbr.rel (0) target = $region33
    $region32: #{gated_encoder_forward.1} parent=1 // pred_region
      %254 = dma.done [#allocation4], 512
    $region33: #{gated_encoder_forward.1} parent=1 // pred_fallthru
      _
    %255 = vsyncpa [#allocation3], 1
    %256 = vsyncpa [#allocation6], 1
    %257 = vsyncpa [#allocation4], 1

</llo_original>
